<compile_context>
chip_gen: v7x
topology: tpu7x:2x2x1
jax: 0.10.0
libtpu: 0.0.40
codegen_flags: <defaults>
</compile_context>

<pallas_src>
import functools

import jax
import jax.numpy as jnp
from jax.experimental import pallas as pl
from jax.experimental.pallas import tpu as pltpu

LANES = 128
OUT_LANES = 2 * LANES  # (y0, y1) pairs for the 128 samples of an input row


def qnetwork_kernel(params_ref, x_ref, d_ref, out_ref):
    # params_ref: SMEM [10] f32
    #   [0] w1[0,0]  [1] w1[0,1]  [2] b1[0]  [3] b1[1]
    #   [4] w2[0,0]  [5] w2[0,1]  [6] w2[1,0]  [7] w2[1,1]
    #   [8] b2[0]    [9] b2[1]
    # x_ref:   VMEM [t_rows, 128] f32   (lane-dense batch slab)
    # d_ref:   VMEM [128, 256]  f32     interleave matrix, D[k, 2k] = D[k, 2k+1] = 1
    # out_ref: VMEM [t_rows, 256] f32   lanes (2k, 2k+1) = (y0, y1) of sample k
    w1_0 = params_ref[0]
    w1_1 = params_ref[1]
    b1_0 = params_ref[2]
    b1_1 = params_ref[3]
    w2_00 = params_ref[4]
    w2_01 = params_ref[5]
    w2_10 = params_ref[6]
    w2_11 = params_ref[7]
    b2_0 = params_ref[8]
    b2_1 = params_ref[9]

    # Duplicate each sample into an adjacent lane pair on the MXU:
    # x_il[:, 2k] = x_il[:, 2k+1] = x[:, k].  Exactly one nonzero (1.0) per
    # output column, HIGHEST precision => numerically exact.
    x_il = jnp.dot(
        x_ref[...],
        d_ref[...],
        preferred_element_type=jnp.float32,
        precision=jax.lax.Precision.HIGHEST,
    )

    # Per-lane output feature: even lane -> feature 0, odd lane -> feature 1.
    lane = jax.lax.broadcasted_iota(jnp.int32, (1, OUT_LANES), 1)
    is_f0 = (lane & 1) == 0
    c0 = jnp.where(is_f0, w2_00, w2_01)  # fc2 weight on h0 for this lane's feature
    c1 = jnp.where(is_f0, w2_10, w2_11)  # fc2 weight on h1
    cb = jnp.where(is_f0, b2_0, b2_1)    # fc2 bias

    # fc1 + ReLU, then fc2 — all elementwise on the VPU in the interleaved domain.
    h0 = jnp.maximum(x_il * w1_0 + b1_0, 0.0)
    h1 = jnp.maximum(x_il * w1_1 + b1_1, 0.0)
    out_ref[...] = h0 * c0 + (h1 * c1 + cb)


@functools.partial(jax.jit, static_argnames=("tile_rows",))
def qnetwork_forward(x, w1, b1, w2, b2, *, tile_rows=1024):
    """x: [B, 1] float32. w1:[1,2] b1:[1,2] w2:[2,2] b2:[1,2]. Returns [B, 2] float32."""
    B = x.shape[0]

    # ---- lane-dense layout: [B,1] -> [rows8, 128], padded only to 8-row multiple ----
    rows = pl.cdiv(B, LANES)
    rows8 = pl.cdiv(rows, 8) * 8
    n_pad = rows8 * LANES

    # Tile selection: aim for >=4 grid steps (>=2 feeds both v7x TensorCores),
    # rows a multiple of 8, capped at tile_rows.  Last block may be partial.
    target_steps = 4
    t_rows = min(tile_rows, ((pl.cdiv(rows8, target_steps) + 7) // 8) * 8)
    t_rows = max(8, t_rows)
    num_tiles = pl.cdiv(rows8, t_rows)

    x_flat = x.reshape(B).astype(jnp.float32)
    if n_pad != B:                      # fast path: no pad when B % 1024 == 0
        x_flat = jnp.pad(x_flat, (0, n_pad - B))
    x2d = x_flat.reshape(rows8, LANES)

    # ---- 10 weights packed into one SMEM-resident scalar table ----
    params = jnp.concatenate(
        [w1.reshape(-1), b1.reshape(-1), w2.reshape(-1), b2.reshape(-1)]
    ).astype(jnp.float32)

    # ---- 0/1 interleave matrix D[k, 2k] = D[k, 2k+1] = 1 (VMEM-resident, fetched once) ----
    k_idx = jax.lax.broadcasted_iota(jnp.int32, (LANES, OUT_LANES), 0)
    c_idx = jax.lax.broadcasted_iota(jnp.int32, (LANES, OUT_LANES), 1)
    d_mat = (c_idx // 2 == k_idx).astype(jnp.float32)

    bytes_accessed = n_pad * 4 + n_pad * 2 * 4 + LANES * OUT_LANES * 4 + 10 * 4
    flops = n_pad * (2 * OUT_LANES + 20)  # interleave matmul + elementwise VPU work

    y = pl.pallas_call(
        qnetwork_kernel,
        out_shape=jax.ShapeDtypeStruct((rows8, OUT_LANES), jnp.float32),
        grid=(num_tiles,),
        in_specs=[
            pl.BlockSpec(memory_space=pltpu.MemorySpace.SMEM),       # params (whole, SMEM)
            pl.BlockSpec((t_rows, LANES), lambda i: (i, 0)),         # x slab
            pl.BlockSpec((LANES, OUT_LANES), lambda i: (0, 0)),      # interleave matrix (resident)
        ],
        out_specs=pl.BlockSpec((t_rows, OUT_LANES), lambda i: (i, 0)),
        compiler_params=pltpu.CompilerParams(
            dimension_semantics=("parallel",),
        ),
        cost_estimate=pl.CostEstimate(
            flops=flops, transcendentals=0, bytes_accessed=bytes_accessed
        ),
    )(params, x2d, d_mat)

    # ---- zero-copy reshape to [rows8*128, 2]; slice only when B is unaligned ----
    y = y.reshape(rows8 * LANES, 2)
    if n_pad != B:
        y = y[:B]
    return y


def init_params(key):
    # Deterministic synthetic parameters with the same shapes as the PyTorch
    # module: Linear(1, 2) and Linear(2, 2). Stored pre-transposed ([in, out]).
    k1, k2, k3, k4 = jax.random.split(key, 4)
    w1 = jax.random.normal(k1, (1, 2), jnp.float32) * 0.5
    b1 = jax.random.normal(k2, (1, 2), jnp.float32) * 0.1
    w2 = jax.random.normal(k3, (2, 2), jnp.float32) * 0.5
    b2 = jax.random.normal(k4, (1, 2), jnp.float32) * 0.1
    return w1, b1, w2, b2


if __name__ == "__main__":
    key = jax.random.PRNGKey(0)
    k_x, k_p = jax.random.split(key)
    w1, b1, w2, b2 = init_params(k_p)

    # Cover: tiny single-tile batch, padded remainder (B % 128 != 0), and the
    # multi-tile + partial-last-block path.
    for B in (8, 1000, 4500):
        x = jax.random.normal(jax.random.fold_in(k_x, B), (B, 1), jnp.float32)
        y = qnetwork_forward(x, w1, b1, w2, b2)
        jax.block_until_ready(y)

        # Exact elementwise f32 reference (same semantics as the PyTorch forward).
        xf = x[:, 0]
        h0 = jnp.maximum(xf * w1[0, 0] + b1[0, 0], 0.0)
        h1 = jnp.maximum(xf * w1[0, 1] + b1[0, 1], 0.0)
        y_ref = jnp.stack(
            [h0 * w2[0, 0] + h1 * w2[1, 0] + b2[0, 0],
             h0 * w2[0, 1] + h1 * w2[1, 1] + b2[0, 1]],
            axis=-1,
        )

        assert y.shape == (B, 2), f"bad shape at B={B}: {y.shape}"
        assert jnp.allclose(y, y_ref, atol=1e-5, rtol=1e-5), f"mismatch at B={B}"

    print("KERNEL_OK")
</pallas_src>

<mosaic_0001>
module attributes {stable_mosaic.version = 11 : i64} {
  func.func @qnetwork_kernel(%arg0: i32, %arg1: memref<10xf32, #tpu.memory_space<smem>>, %arg2: memref<8x128xf32, #tpu.memory_space<vmem>>, %arg3: memref<128x256xf32, #tpu.memory_space<vmem>>, %arg4: memref<8x256xf32, #tpu.memory_space<vmem>>) attributes {dimension_semantics = [#tpu.dimension_semantics<parallel>], iteration_bounds = array<i64: 1>, scalar_prefetch = 0 : i64, scratch_operands = 0 : i64, tpu.core_type = #tpu.core_type<tc>, window_params = [{transform_indices = @transform_0, window_bounds = array<i64: 10>}, {transform_indices = @transform_1, window_bounds = array<i64: 8, 128>}, {pipeline_mode = #tpu.pipeline_mode<synchronous>, transform_indices = @transform_2, window_bounds = array<i64: 128, 256>}, {transform_indices = @transform_3, window_bounds = array<i64: 8, 256>}]} {
    %c0 = arith.constant 0 : index
    %0 = memref.load %arg1[%c0] : memref<10xf32, #tpu.memory_space<smem>>
    %c1 = arith.constant 1 : index
    %1 = memref.load %arg1[%c1] : memref<10xf32, #tpu.memory_space<smem>>
    %c2 = arith.constant 2 : index
    %2 = memref.load %arg1[%c2] : memref<10xf32, #tpu.memory_space<smem>>
    %c3 = arith.constant 3 : index
    %3 = memref.load %arg1[%c3] : memref<10xf32, #tpu.memory_space<smem>>
    %c4 = arith.constant 4 : index
    %4 = memref.load %arg1[%c4] : memref<10xf32, #tpu.memory_space<smem>>
    %c5 = arith.constant 5 : index
    %5 = memref.load %arg1[%c5] : memref<10xf32, #tpu.memory_space<smem>>
    %c6 = arith.constant 6 : index
    %6 = memref.load %arg1[%c6] : memref<10xf32, #tpu.memory_space<smem>>
    %c7 = arith.constant 7 : index
    %7 = memref.load %arg1[%c7] : memref<10xf32, #tpu.memory_space<smem>>
    %c8 = arith.constant 8 : index
    %8 = memref.load %arg1[%c8] : memref<10xf32, #tpu.memory_space<smem>>
    %c9 = arith.constant 9 : index
    %9 = memref.load %arg1[%c9] : memref<10xf32, #tpu.memory_space<smem>>
    %c0_0 = arith.constant 0 : index
    %c0_1 = arith.constant 0 : index
    %10 = vector.load %arg2[%c0_0, %c0_1] : memref<8x128xf32, #tpu.memory_space<vmem>>, vector<8x128xf32>
    %c0_2 = arith.constant 0 : index
    %c0_3 = arith.constant 0 : index
    %11 = vector.load %arg3[%c0_2, %c0_3] : memref<128x256xf32, #tpu.memory_space<vmem>>, vector<128x256xf32>
    %cst = arith.constant dense<0.000000e+00> : vector<8x256xf32>
    %12 = tpu.matmul %10, %11, %cst {dimension_numbers = #tpu.dot_dimension_numbers<[1], [0], [0], [1], [0, 0, 1, 1], [], []>, precision = #tpu.contract_precision<fp32>} : vector<8x128xf32>, vector<128x256xf32>, vector<8x256xf32> -> vector<8x256xf32>
    %13 = tpu.iota {dimensions = array<i32: 1>} : vector<1x256xi32>
    %c1_i32 = arith.constant 1 : i32
    %14 = vector.broadcast %c1_i32 : i32 to vector<1x256xi32>
    %15 = arith.andi %13, %14 : vector<1x256xi32>
    %c0_i32 = arith.constant 0 : i32
    %16 = vector.broadcast %c0_i32 : i32 to vector<1x256xi32>
    %17 = arith.cmpi eq, %15, %16 : vector<1x256xi32>
    %18 = vector.broadcast %4 : f32 to vector<1x256xf32>
    %19 = vector.broadcast %5 : f32 to vector<1x256xf32>
    %20 = arith.select %17, %18, %19 : vector<1x256xi1>, vector<1x256xf32>
    %21 = vector.broadcast %6 : f32 to vector<1x256xf32>
    %22 = vector.broadcast %7 : f32 to vector<1x256xf32>
    %23 = arith.select %17, %21, %22 : vector<1x256xi1>, vector<1x256xf32>
    %24 = vector.broadcast %8 : f32 to vector<1x256xf32>
    %25 = vector.broadcast %9 : f32 to vector<1x256xf32>
    %26 = arith.select %17, %24, %25 : vector<1x256xi1>, vector<1x256xf32>
    %27 = vector.broadcast %0 : f32 to vector<8x256xf32>
    %28 = arith.mulf %12, %27 : vector<8x256xf32>
    %29 = vector.broadcast %2 : f32 to vector<8x256xf32>
    %30 = arith.addf %28, %29 : vector<8x256xf32>
    %cst_4 = arith.constant 0.000000e+00 : f32
    %31 = vector.broadcast %cst_4 : f32 to vector<8x256xf32>
    %32 = arith.maximumf %30, %31 : vector<8x256xf32>
    %33 = vector.broadcast %1 : f32 to vector<8x256xf32>
    %34 = arith.mulf %12, %33 : vector<8x256xf32>
    %35 = vector.broadcast %3 : f32 to vector<8x256xf32>
    %36 = arith.addf %34, %35 : vector<8x256xf32>
    %cst_5 = arith.constant 0.000000e+00 : f32
    %37 = vector.broadcast %cst_5 : f32 to vector<8x256xf32>
    %38 = arith.maximumf %36, %37 : vector<8x256xf32>
    %39 = vector.broadcast %20 : vector<1x256xf32> to vector<8x256xf32>
    %40 = arith.mulf %32, %39 : vector<8x256xf32>
    %41 = vector.broadcast %23 : vector<1x256xf32> to vector<8x256xf32>
    %42 = arith.mulf %38, %41 : vector<8x256xf32>
    %43 = vector.broadcast %26 : vector<1x256xf32> to vector<8x256xf32>
    %44 = arith.addf %42, %43 : vector<8x256xf32>
    %45 = arith.addf %40, %44 : vector<8x256xf32>
    %c0_6 = arith.constant 0 : index
    %c0_7 = arith.constant 0 : index
    %46 = vector.load %arg4[%c0_6, %c0_7] : memref<8x256xf32, #tpu.memory_space<vmem>>, vector<8x256xf32>
    tpu.vector_store %arg4[%c0_6, %c0_7], %45 {strides = array<i32>} : memref<8x256xf32, #tpu.memory_space<vmem>>, vector<8x256xf32>,
    return
  }
  func.func @transform_0(%arg0: i32) -> i32 {
    %c0_i32 = arith.constant 0 : i32
    %c0_i32_0 = arith.constant 0 : i32
    return %c0_i32 : i32
  }
  func.func @transform_1(%arg0: i32) -> (i32, i32) {
    %c0_i32 = arith.constant 0 : i32
    %c0_i32_0 = arith.constant 0 : i32
    return %arg0, %c0_i32 : i32, i32
  }
  func.func @transform_2(%arg0: i32) -> (i32, i32) {
    %c0_i32 = arith.constant 0 : i32
    %c0_i32_0 = arith.constant 0 : i32
    %c0_i32_1 = arith.constant 0 : i32
    return %c0_i32, %c0_i32_0 : i32, i32
  }
  func.func @transform_3(%arg0: i32) -> (i32, i32) {
    %c0_i32 = arith.constant 0 : i32
    %c0_i32_0 = arith.constant 0 : i32
    return %arg0, %c0_i32 : i32, i32
  }
}

</mosaic_0001>

<llo_original>
// kernel: qnetwork_forward.1
$region0: #{qnetwork_forward.1}
  #allocation0 [shape = 'u32[]', space=smem, size = 0x4, offset = 0x4, fixed_abs, tag = 'smem constant byte address 0x4 - core index']
  #allocation1 [shape = 'u32[144,128]{1,0:T(1,128)}', space=vmem, size = 0x12000, scoped, tag = 'internal scratch']
  %s0 = inlined_call_operand.vmem [shape: f32[10], index: 0, kind: input, shape index: {}]
  %s1 = inlined_call_operand.vmem [shape: f32[8,128], index: 1, kind: input, shape index: {}]
  %s2 = inlined_call_operand.vmem [shape: f32[128,256], index: 2, kind: input, shape index: {}]
  %s3 = inlined_call_operand.vmem [shape: f32[8,256], index: 3, kind: output, shape index: {}]
  %s4 = sld [smem:[#allocation0]]
  $region26: #{qnetwork_forward.1} parent=0
    _
  %s6 = ssub.s32 1, %s4
  %s7 = scalar_select 0, %s6, %s4
  $region1: #{qnetwork_forward.1} parent=0
    #allocation2 [shape = 'u8[512]{0}', space=smem, size = 0x200, scoped, tag = 'input window, operand 0, single buffered']
    #allocation3 [shape = 's32[1]{0}', space=sflag, size = 0x4, scoped, tag = 'scoped memory for qnetwork_forward.1']
    %8 = vsyncpa [#allocation3], 0
    // Predicated region
    $region2: #{qnetwork_forward.1} parent=1 // pred_check
      _
    $region3: #{qnetwork_forward.1} parent=1 // pred_check_branch
      %10 = sbr.rel (0) target = $region5
    $region4: #{qnetwork_forward.1} parent=1 // pred_region
      %s12 = ssub.s32 16, 16
      %13 = vsyncadd [#allocation3], %s12
      %s15 = sshll.u32 %s0, 4
      %s16 = int_to_ptr.vmem [resolvable:$true] %s15
      %18 = dma.vmem_to_smem %s16, 16, [#allocation2], [#allocation3]
    $region5: #{qnetwork_forward.1} parent=1 // pred_fallthru
      _
    // Predicated region
    $region6: #{qnetwork_forward.1} parent=1 // pred_check
      _
    $region7: #{qnetwork_forward.1} parent=1 // pred_check_branch
      %20 = sbr.rel (0) target = $region9
    $region8: #{qnetwork_forward.1} parent=1 // pred_region
      _
    $region9: #{qnetwork_forward.1} parent=1 // pred_fallthru
      _
    // Predicated region
    $region10: #{qnetwork_forward.1} parent=1 // pred_check
      _
    $region11: #{qnetwork_forward.1} parent=1 // pred_check_branch
      %22 = sbr.rel (0) target = $region13
    $region12: #{qnetwork_forward.1} parent=1 // pred_region
      _
    $region13: #{qnetwork_forward.1} parent=1 // pred_fallthru
      _
    // Predicated region
    $region14: #{qnetwork_forward.1} parent=1 // pred_check
      _
    $region15: #{qnetwork_forward.1} parent=1 // pred_check_branch
      %24 = sbr.rel (0) target = $region17
    $region16: #{qnetwork_forward.1} parent=1 // pred_region
      %25 = dma.done [#allocation3], 16
    $region17: #{qnetwork_forward.1} parent=1 // pred_fallthru
      _
    %26 = sfence
    %s27 = sld [smem:[#allocation2]]
    %s28 = sld [smem:[#allocation2 + $0x1]]
    %s29 = sld [smem:[#allocation2 + $0x2]]
    %s30 = sld [smem:[#allocation2 + $0x3]]
    %s31 = sld [smem:[#allocation2 + $0x4]]
    %s32 = sld [smem:[#allocation2 + $0x5]]
    %s33 = sld [smem:[#allocation2 + $0x6]]
    %s34 = sld [smem:[#allocation2 + $0x7]]
    %s35 = sld [smem:[#allocation2 + $0x8]]
    %s36 = sld [smem:[#allocation2 + $0x9]]
    %v37 = vld [vmem:[%s1] sm:$0xff]
    %v38 = vld [vmem:[%s2] sm:$0xff]
    %v39 = vld [vmem:[%s2 + $0x8] sm:$0xff]
    %v40 = vld [vmem:[%s2 + $0x10] sm:$0xff]
    %v41 = vld [vmem:[%s2 + $0x18] sm:$0xff]
    %v42 = vld [vmem:[%s2 + $0x20] sm:$0xff]
    %v43 = vld [vmem:[%s2 + $0x28] sm:$0xff]
    %v44 = vld [vmem:[%s2 + $0x30] sm:$0xff]
    %v45 = vld [vmem:[%s2 + $0x38] sm:$0xff]
    %v46 = vld [vmem:[%s2 + $0x40] sm:$0xff]
    %v47 = vld [vmem:[%s2 + $0x48] sm:$0xff]
    %v48 = vld [vmem:[%s2 + $0x50] sm:$0xff]
    %v49 = vld [vmem:[%s2 + $0x58] sm:$0xff]
    %v50 = vld [vmem:[%s2 + $0x60] sm:$0xff]
    %v51 = vld [vmem:[%s2 + $0x68] sm:$0xff]
    %v52 = vld [vmem:[%s2 + $0x70] sm:$0xff]
    %v53 = vld [vmem:[%s2 + $0x78] sm:$0xff]
    %v54 = vld [vmem:[%s2 + $0x80] sm:$0xff]
    %v55 = vld [vmem:[%s2 + $0x88] sm:$0xff]
    %v56 = vld [vmem:[%s2 + $0x90] sm:$0xff]
    %v57 = vld [vmem:[%s2 + $0x98] sm:$0xff]
    %v58 = vld [vmem:[%s2 + $0xa0] sm:$0xff]
    %v59 = vld [vmem:[%s2 + $0xa8] sm:$0xff]
    %v60 = vld [vmem:[%s2 + $0xb0] sm:$0xff]
    %v61 = vld [vmem:[%s2 + $0xb8] sm:$0xff]
    %v62 = vld [vmem:[%s2 + $0xc0] sm:$0xff]
    %v63 = vld [vmem:[%s2 + $0xc8] sm:$0xff]
    %v64 = vld [vmem:[%s2 + $0xd0] sm:$0xff]
    %v65 = vld [vmem:[%s2 + $0xd8] sm:$0xff]
    %v66 = vld [vmem:[%s2 + $0xe0] sm:$0xff]
    %v67 = vld [vmem:[%s2 + $0xe8] sm:$0xff]
    %v68 = vld [vmem:[%s2 + $0xf0] sm:$0xff]
    %v69 = vld [vmem:[%s2 + $0xf8] sm:$0xff]
    %v70 = vand.u32 %v39, 4294901760
    %71 = vmatprep.subr.mxu0 %v70
    %v72 = vand.u32 %v38, 4294901760
    %73 = vmatpush1.msra.mxu0 %v72
    %v74 = vand.u32 %v41, 4294901760
    %75 = vmatprep.subr.mxu0 %v74
    %v76 = vand.u32 %v40, 4294901760
    %77 = vmatpush1.msra.mxu0 %v76
    %v78 = vand.u32 %v43, 4294901760
    %79 = vmatprep.subr.mxu0 %v78
    %v80 = vand.u32 %v42, 4294901760
    %81 = vmatpush1.msra.mxu0 %v80
    %v82 = vand.u32 %v45, 4294901760
    %83 = vmatprep.subr.mxu0 %v82
    %v84 = vand.u32 %v44, 4294901760
    %85 = vmatpush1.msra.mxu0 %v84
    %v86 = vand.u32 %v47, 4294901760
    %87 = vmatprep.subr.mxu0 %v86
    %v88 = vand.u32 %v46, 4294901760
    %89 = vmatpush1.msra.mxu0 %v88
    %v90 = vand.u32 %v49, 4294901760
    %91 = vmatprep.subr.mxu0 %v90
    %v92 = vand.u32 %v48, 4294901760
    %93 = vmatpush1.msra.mxu0 %v92
    %v94 = vand.u32 %v51, 4294901760
    %95 = vmatprep.subr.mxu0 %v94
    %v96 = vand.u32 %v50, 4294901760
    %97 = vmatpush1.msra.mxu0 %v96
    %v98 = vand.u32 %v53, 4294901760
    %99 = vmatprep.subr.mxu0 %v98
    %v100 = vand.u32 %v52, 4294901760
    %101 = vmatpush1.msra.mxu0 %v100
    %v102 = vand.u32 %v55, 4294901760
    %103 = vmatprep.subr.mxu0 %v102
    %v104 = vand.u32 %v54, 4294901760
    %105 = vmatpush1.msra.mxu0 %v104
    %v106 = vand.u32 %v57, 4294901760
    %107 = vmatprep.subr.mxu0 %v106
    %v108 = vand.u32 %v56, 4294901760
    %109 = vmatpush1.msra.mxu0 %v108
    %v110 = vand.u32 %v59, 4294901760
    %111 = vmatprep.subr.mxu0 %v110
    %v112 = vand.u32 %v58, 4294901760
    %113 = vmatpush1.msra.mxu0 %v112
    %v114 = vand.u32 %v61, 4294901760
    %115 = vmatprep.subr.mxu0 %v114
    %v116 = vand.u32 %v60, 4294901760
    %117 = vmatpush1.msra.mxu0 %v116
    %v118 = vand.u32 %v63, 4294901760
    %119 = vmatprep.subr.mxu0 %v118
    %v120 = vand.u32 %v62, 4294901760
    %121 = vmatpush1.msra.mxu0 %v120
    %v122 = vand.u32 %v65, 4294901760
    %123 = vmatprep.subr.mxu0 %v122
    %v124 = vand.u32 %v64, 4294901760
    %125 = vmatpush1.msra.mxu0 %v124
    %v126 = vand.u32 %v67, 4294901760
    %127 = vmatprep.subr.mxu0 %v126
    %v128 = vand.u32 %v66, 4294901760
    %129 = vmatpush1.msra.mxu0 %v128
    %v130 = vand.u32 %v69, 4294901760
    %131 = vmatprep.subr.mxu0 %v130
    %v132 = vand.u32 %v68, 4294901760
    %133 = vmatpush1.msra.mxu0 %v132
    %134 = vmatprep.subr.mxu0 0.0
    %135 = vmatpush1.msra.mxu0 0.0
    %136 = vmatprep.subr.mxu0 0.0
    %137 = vmatpush1.msra.mxu0 0.0
    %138 = vmatprep.subr.mxu0 0.0
    %139 = vmatpush1.msra.mxu0 0.0
    %140 = vmatprep.subr.mxu0 0.0
    %141 = vmatpush1.msra.mxu0 0.0
    %142 = vmatprep.subr.mxu0 0.0
    %143 = vmatpush1.msra.mxu0 0.0
    %144 = vmatprep.subr.mxu0 0.0
    %145 = vmatpush1.msra.mxu0 0.0
    %146 = vmatprep.subr.mxu0 0.0
    %147 = vmatpush1.msra.mxu0 0.0
    %148 = vmatprep.subr.mxu0 0.0
    %149 = vmatpush1.msra.mxu0 0.0
    %150 = vmatprep.subr.mxu0 0.0
    %151 = vmatpush1.msra.mxu0 0.0
    %152 = vmatprep.subr.mxu0 0.0
    %153 = vmatpush1.msra.mxu0 0.0
    %154 = vmatprep.subr.mxu0 0.0
    %155 = vmatpush1.msra.mxu0 0.0
    %156 = vmatprep.subr.mxu0 0.0
    %157 = vmatpush1.msra.mxu0 0.0
    %158 = vmatprep.subr.mxu0 0.0
    %159 = vmatpush1.msra.mxu0 0.0
    %160 = vmatprep.subr.mxu0 0.0
    %161 = vmatpush1.msra.mxu0 0.0
    %162 = vmatprep.subr.mxu0 0.0
    %163 = vmatpush1.msra.mxu0 0.0
    %164 = vmatprep.subr.mxu0 0.0
    %165 = vmatpush1.msra.mxu0 0.0
    %166 = vmatprep.mubr.f32.mxu0 0.0
    %v167 = vand.u32 %v37, 4294901760
    %v168 = vsub.f32 %v37, %v167
    %v169 = vand.u32 %v168, 4294901760
    %v170 = vsub.f32 %v168, %v169
    %v171 = vand.u32 %v170, 4294901760
    %172 = vmatmul.mubr.f32.gmra.mrb[0].mxu0 %v171
    %v173 = vpop.f32.mrb[0].mxu0
    %v174 = vadd.f32 0.0, %v173
    %v175 = vpop.f32.mrb[0].mxu0
    %v176 = vadd.f32 0.0, %v175
    %177 = vdwg.mxu0
    %v178 = vand.u32 %v39, 4294901760
    %v179 = vsub.f32 %v39, %v178
    %v180 = vand.u32 %v179, 4294901760
    %v181 = vsub.f32 %v179, %v180
    %v182 = vand.u32 %v181, 4294901760
    %183 = vmatprep.subr.mxu0 %v182
    %v184 = vand.u32 %v38, 4294901760
    %v185 = vsub.f32 %v38, %v184
    %v186 = vand.u32 %v185, 4294901760
    %v187 = vsub.f32 %v185, %v186
    %v188 = vand.u32 %v187, 4294901760
    %189 = vmatpush1.msra.mxu0 %v188
    %v190 = vand.u32 %v41, 4294901760
    %v191 = vsub.f32 %v41, %v190
    %v192 = vand.u32 %v191, 4294901760
    %v193 = vsub.f32 %v191, %v192
    %v194 = vand.u32 %v193, 4294901760
    %195 = vmatprep.subr.mxu0 %v194
    %v196 = vand.u32 %v40, 4294901760
    %v197 = vsub.f32 %v40, %v196
    %v198 = vand.u32 %v197, 4294901760
    %v199 = vsub.f32 %v197, %v198
    %v200 = vand.u32 %v199, 4294901760
    %201 = vmatpush1.msra.mxu0 %v200
    %v202 = vand.u32 %v43, 4294901760
    %v203 = vsub.f32 %v43, %v202
    %v204 = vand.u32 %v203, 4294901760
    %v205 = vsub.f32 %v203, %v204
    %v206 = vand.u32 %v205, 4294901760
    %207 = vmatprep.subr.mxu0 %v206
    %v208 = vand.u32 %v42, 4294901760
    %v209 = vsub.f32 %v42, %v208
    %v210 = vand.u32 %v209, 4294901760
    %v211 = vsub.f32 %v209, %v210
    %v212 = vand.u32 %v211, 4294901760
    %213 = vmatpush1.msra.mxu0 %v212
    %v214 = vand.u32 %v45, 4294901760
    %v215 = vsub.f32 %v45, %v214
    %v216 = vand.u32 %v215, 4294901760
    %v217 = vsub.f32 %v215, %v216
    %v218 = vand.u32 %v217, 4294901760
    %219 = vmatprep.subr.mxu0 %v218
    %v220 = vand.u32 %v44, 4294901760
    %v221 = vsub.f32 %v44, %v220
    %v222 = vand.u32 %v221, 4294901760
    %v223 = vsub.f32 %v221, %v222
    %v224 = vand.u32 %v223, 4294901760
    %225 = vmatpush1.msra.mxu0 %v224
    %v226 = vand.u32 %v47, 4294901760
    %v227 = vsub.f32 %v47, %v226
    %v228 = vand.u32 %v227, 4294901760
    %v229 = vsub.f32 %v227, %v228
    %v230 = vand.u32 %v229, 4294901760
    %231 = vmatprep.subr.mxu0 %v230
    %v232 = vand.u32 %v46, 4294901760
    %v233 = vsub.f32 %v46, %v232
    %v234 = vand.u32 %v233, 4294901760
    %v235 = vsub.f32 %v233, %v234
    %v236 = vand.u32 %v235, 4294901760
    %237 = vmatpush1.msra.mxu0 %v236
    %v238 = vand.u32 %v49, 4294901760
    %v239 = vsub.f32 %v49, %v238
    %v240 = vand.u32 %v239, 4294901760
    %v241 = vsub.f32 %v239, %v240
    %v242 = vand.u32 %v241, 4294901760
    %243 = vmatprep.subr.mxu0 %v242
    %v244 = vand.u32 %v48, 4294901760
    %v245 = vsub.f32 %v48, %v244
    %v246 = vand.u32 %v245, 4294901760
    %v247 = vsub.f32 %v245, %v246
    %v248 = vand.u32 %v247, 4294901760
    %249 = vmatpush1.msra.mxu0 %v248
    %v250 = vand.u32 %v51, 4294901760
    %v251 = vsub.f32 %v51, %v250
    %v252 = vand.u32 %v251, 4294901760
    %v253 = vsub.f32 %v251, %v252
    %v254 = vand.u32 %v253, 4294901760
    %255 = vmatprep.subr.mxu0 %v254
    %v256 = vand.u32 %v50, 4294901760
    %v257 = vsub.f32 %v50, %v256
    %v258 = vand.u32 %v257, 4294901760
    %v259 = vsub.f32 %v257, %v258
    %v260 = vand.u32 %v259, 4294901760
    %261 = vmatpush1.msra.mxu0 %v260
    %v262 = vand.u32 %v53, 4294901760
    %v263 = vsub.f32 %v53, %v262
    %v264 = vand.u32 %v263, 4294901760
    %v265 = vsub.f32 %v263, %v264
    %v266 = vand.u32 %v265, 4294901760
    %267 = vmatprep.subr.mxu0 %v266
    %v268 = vand.u32 %v52, 4294901760
    %v269 = vsub.f32 %v52, %v268
    %v270 = vand.u32 %v269, 4294901760
    %v271 = vsub.f32 %v269, %v270
    %v272 = vand.u32 %v271, 4294901760
    %273 = vmatpush1.msra.mxu0 %v272
    %v274 = vand.u32 %v55, 4294901760
    %v275 = vsub.f32 %v55, %v274
    %v276 = vand.u32 %v275, 4294901760
    %v277 = vsub.f32 %v275, %v276
    %v278 = vand.u32 %v277, 4294901760
    %279 = vmatprep.subr.mxu0 %v278
    %v280 = vand.u32 %v54, 4294901760
    %v281 = vsub.f32 %v54, %v280
    %v282 = vand.u32 %v281, 4294901760
    %v283 = vsub.f32 %v281, %v282
    %v284 = vand.u32 %v283, 4294901760
    %285 = vmatpush1.msra.mxu0 %v284
    %v286 = vand.u32 %v57, 4294901760
    %v287 = vsub.f32 %v57, %v286
    %v288 = vand.u32 %v287, 4294901760
    %v289 = vsub.f32 %v287, %v288
    %v290 = vand.u32 %v289, 4294901760
    %291 = vmatprep.subr.mxu0 %v290
    %v292 = vand.u32 %v56, 4294901760
    %v293 = vsub.f32 %v56, %v292
    %v294 = vand.u32 %v293, 4294901760
    %v295 = vsub.f32 %v293, %v294
    %v296 = vand.u32 %v295, 4294901760
    %297 = vmatpush1.msra.mxu0 %v296
    %v298 = vand.u32 %v59, 4294901760
    %v299 = vsub.f32 %v59, %v298
    %v300 = vand.u32 %v299, 4294901760
    %v301 = vsub.f32 %v299, %v300
    %v302 = vand.u32 %v301, 4294901760
    %303 = vmatprep.subr.mxu0 %v302
    %v304 = vand.u32 %v58, 4294901760
    %v305 = vsub.f32 %v58, %v304
    %v306 = vand.u32 %v305, 4294901760
    %v307 = vsub.f32 %v305, %v306
    %v308 = vand.u32 %v307, 4294901760
    %309 = vmatpush1.msra.mxu0 %v308
    %v310 = vand.u32 %v61, 4294901760
    %v311 = vsub.f32 %v61, %v310
    %v312 = vand.u32 %v311, 4294901760
    %v313 = vsub.f32 %v311, %v312
    %v314 = vand.u32 %v313, 4294901760
    %315 = vmatprep.subr.mxu0 %v314
    %v316 = vand.u32 %v60, 4294901760
    %v317 = vsub.f32 %v60, %v316
    %v318 = vand.u32 %v317, 4294901760
    %v319 = vsub.f32 %v317, %v318
    %v320 = vand.u32 %v319, 4294901760
    %321 = vmatpush1.msra.mxu0 %v320
    %v322 = vand.u32 %v63, 4294901760
    %v323 = vsub.f32 %v63, %v322
    %v324 = vand.u32 %v323, 4294901760
    %v325 = vsub.f32 %v323, %v324
    %v326 = vand.u32 %v325, 4294901760
    %327 = vmatprep.subr.mxu0 %v326
    %v328 = vand.u32 %v62, 4294901760
    %v329 = vsub.f32 %v62, %v328
    %v330 = vand.u32 %v329, 4294901760
    %v331 = vsub.f32 %v329, %v330
    %v332 = vand.u32 %v331, 4294901760
    %333 = vmatpush1.msra.mxu0 %v332
    %v334 = vand.u32 %v65, 4294901760
    %v335 = vsub.f32 %v65, %v334
    %v336 = vand.u32 %v335, 4294901760
    %v337 = vsub.f32 %v335, %v336
    %v338 = vand.u32 %v337, 4294901760
    %339 = vmatprep.subr.mxu0 %v338
    %v340 = vand.u32 %v64, 4294901760
    %v341 = vsub.f32 %v64, %v340
    %v342 = vand.u32 %v341, 4294901760
    %v343 = vsub.f32 %v341, %v342
    %v344 = vand.u32 %v343, 4294901760
    %345 = vmatpush1.msra.mxu0 %v344
    %v346 = vand.u32 %v67, 4294901760
    %v347 = vsub.f32 %v67, %v346
    %v348 = vand.u32 %v347, 4294901760
    %v349 = vsub.f32 %v347, %v348
    %v350 = vand.u32 %v349, 4294901760
    %351 = vmatprep.subr.mxu0 %v350
    %v352 = vand.u32 %v66, 4294901760
    %v353 = vsub.f32 %v66, %v352
    %v354 = vand.u32 %v353, 4294901760
    %v355 = vsub.f32 %v353, %v354
    %v356 = vand.u32 %v355, 4294901760
    %357 = vmatpush1.msra.mxu0 %v356
    %v358 = vand.u32 %v69, 4294901760
    %v359 = vsub.f32 %v69, %v358
    %v360 = vand.u32 %v359, 4294901760
    %v361 = vsub.f32 %v359, %v360
    %v362 = vand.u32 %v361, 4294901760
    %363 = vmatprep.subr.mxu0 %v362
    %v364 = vand.u32 %v68, 4294901760
    %v365 = vsub.f32 %v68, %v364
    %v366 = vand.u32 %v365, 4294901760
    %v367 = vsub.f32 %v365, %v366
    %v368 = vand.u32 %v367, 4294901760
    %369 = vmatpush1.msra.mxu0 %v368
    %370 = vmatprep.subr.mxu0 0.0
    %371 = vmatpush1.msra.mxu0 0.0
    %372 = vmatprep.subr.mxu0 0.0
    %373 = vmatpush1.msra.mxu0 0.0
    %374 = vmatprep.subr.mxu0 0.0
    %375 = vmatpush1.msra.mxu0 0.0
    %376 = vmatprep.subr.mxu0 0.0
    %377 = vmatpush1.msra.mxu0 0.0
    %378 = vmatprep.subr.mxu0 0.0
    %379 = vmatpush1.msra.mxu0 0.0
    %380 = vmatprep.subr.mxu0 0.0
    %381 = vmatpush1.msra.mxu0 0.0
    %382 = vmatprep.subr.mxu0 0.0
    %383 = vmatpush1.msra.mxu0 0.0
    %384 = vmatprep.subr.mxu0 0.0
    %385 = vmatpush1.msra.mxu0 0.0
    %386 = vmatprep.subr.mxu0 0.0
    %387 = vmatpush1.msra.mxu0 0.0
    %388 = vmatprep.subr.mxu0 0.0
    %389 = vmatpush1.msra.mxu0 0.0
    %390 = vmatprep.subr.mxu0 0.0
    %391 = vmatpush1.msra.mxu0 0.0
    %392 = vmatprep.subr.mxu0 0.0
    %393 = vmatpush1.msra.mxu0 0.0
    %394 = vmatprep.subr.mxu0 0.0
    %395 = vmatpush1.msra.mxu0 0.0
    %396 = vmatprep.subr.mxu0 0.0
    %397 = vmatpush1.msra.mxu0 0.0
    %398 = vmatprep.subr.mxu0 0.0
    %399 = vmatpush1.msra.mxu0 0.0
    %400 = vmatprep.subr.mxu0 0.0
    %401 = vmatpush1.msra.mxu0 0.0
    %402 = vmatprep.mubr.f32.mxu0 0.0
    %v403 = vand.u32 %v37, 4294901760
    %404 = vmatmul.mubr.f32.gmra.mrb[0].mxu0 %v403
    %v405 = vpop.f32.mrb[0].mxu0
    %v406 = vadd.f32 %v174, %v405
    %v407 = vpop.f32.mrb[0].mxu0
    %v408 = vadd.f32 %v176, %v407
    %409 = vdwg.mxu0
    %v410 = vand.u32 %v39, 4294901760
    %v411 = vsub.f32 %v39, %v410
    %412 = vmatprep.subr.mxu0 %v411
    %v413 = vand.u32 %v38, 4294901760
    %v414 = vsub.f32 %v38, %v413
    %415 = vmatpush1.msra.mxu0 %v414
    %v416 = vand.u32 %v41, 4294901760
    %v417 = vsub.f32 %v41, %v416
    %418 = vmatprep.subr.mxu0 %v417
    %v419 = vand.u32 %v40, 4294901760
    %v420 = vsub.f32 %v40, %v419
    %421 = vmatpush1.msra.mxu0 %v420
    %v422 = vand.u32 %v43, 4294901760
    %v423 = vsub.f32 %v43, %v422
    %424 = vmatprep.subr.mxu0 %v423
    %v425 = vand.u32 %v42, 4294901760
    %v426 = vsub.f32 %v42, %v425
    %427 = vmatpush1.msra.mxu0 %v426
    %v428 = vand.u32 %v45, 4294901760
    %v429 = vsub.f32 %v45, %v428
    %430 = vmatprep.subr.mxu0 %v429
    %v431 = vand.u32 %v44, 4294901760
    %v432 = vsub.f32 %v44, %v431
    %433 = vmatpush1.msra.mxu0 %v432
    %v434 = vand.u32 %v47, 4294901760
    %v435 = vsub.f32 %v47, %v434
    %436 = vmatprep.subr.mxu0 %v435
    %v437 = vand.u32 %v46, 4294901760
    %v438 = vsub.f32 %v46, %v437
    %439 = vmatpush1.msra.mxu0 %v438
    %v440 = vand.u32 %v49, 4294901760
    %v441 = vsub.f32 %v49, %v440
    %442 = vmatprep.subr.mxu0 %v441
    %v443 = vand.u32 %v48, 4294901760
    %v444 = vsub.f32 %v48, %v443
    %445 = vmatpush1.msra.mxu0 %v444
    %v446 = vand.u32 %v51, 4294901760
    %v447 = vsub.f32 %v51, %v446
    %448 = vmatprep.subr.mxu0 %v447
    %v449 = vand.u32 %v50, 4294901760
    %v450 = vsub.f32 %v50, %v449
    %451 = vmatpush1.msra.mxu0 %v450
    %v452 = vand.u32 %v53, 4294901760
    %v453 = vsub.f32 %v53, %v452
    %454 = vmatprep.subr.mxu0 %v453
    %v455 = vand.u32 %v52, 4294901760
    %v456 = vsub.f32 %v52, %v455
    %457 = vmatpush1.msra.mxu0 %v456
    %v458 = vand.u32 %v55, 4294901760
    %v459 = vsub.f32 %v55, %v458
    %460 = vmatprep.subr.mxu0 %v459
    %v461 = vand.u32 %v54, 4294901760
    %v462 = vsub.f32 %v54, %v461
    %463 = vmatpush1.msra.mxu0 %v462
    %v464 = vand.u32 %v57, 4294901760
    %v465 = vsub.f32 %v57, %v464
    %466 = vmatprep.subr.mxu0 %v465
    %v467 = vand.u32 %v56, 4294901760
    %v468 = vsub.f32 %v56, %v467
    %469 = vmatpush1.msra.mxu0 %v468
    %v470 = vand.u32 %v59, 4294901760
    %v471 = vsub.f32 %v59, %v470
    %472 = vmatprep.subr.mxu0 %v471
    %v473 = vand.u32 %v58, 4294901760
    %v474 = vsub.f32 %v58, %v473
    %475 = vmatpush1.msra.mxu0 %v474
    %v476 = vand.u32 %v61, 4294901760
    %v477 = vsub.f32 %v61, %v476
    %478 = vmatprep.subr.mxu0 %v477
    %v479 = vand.u32 %v60, 4294901760
    %v480 = vsub.f32 %v60, %v479
    %481 = vmatpush1.msra.mxu0 %v480
    %v482 = vand.u32 %v63, 4294901760
    %v483 = vsub.f32 %v63, %v482
    %484 = vmatprep.subr.mxu0 %v483
    %v485 = vand.u32 %v62, 4294901760
    %v486 = vsub.f32 %v62, %v485
    %487 = vmatpush1.msra.mxu0 %v486
    %v488 = vand.u32 %v65, 4294901760
    %v489 = vsub.f32 %v65, %v488
    %490 = vmatprep.subr.mxu0 %v489
    %v491 = vand.u32 %v64, 4294901760
    %v492 = vsub.f32 %v64, %v491
    %493 = vmatpush1.msra.mxu0 %v492
    %v494 = vand.u32 %v67, 4294901760
    %v495 = vsub.f32 %v67, %v494
    %496 = vmatprep.subr.mxu0 %v495
    %v497 = vand.u32 %v66, 4294901760
    %v498 = vsub.f32 %v66, %v497
    %499 = vmatpush1.msra.mxu0 %v498
    %v500 = vand.u32 %v69, 4294901760
    %v501 = vsub.f32 %v69, %v500
    %502 = vmatprep.subr.mxu0 %v501
    %v503 = vand.u32 %v68, 4294901760
    %v504 = vsub.f32 %v68, %v503
    %505 = vmatpush1.msra.mxu0 %v504
    %506 = vmatprep.subr.mxu0 0.0
    %507 = vmatpush1.msra.mxu0 0.0
    %508 = vmatprep.subr.mxu0 0.0
    %509 = vmatpush1.msra.mxu0 0.0
    %510 = vmatprep.subr.mxu0 0.0
    %511 = vmatpush1.msra.mxu0 0.0
    %512 = vmatprep.subr.mxu0 0.0
    %513 = vmatpush1.msra.mxu0 0.0
    %514 = vmatprep.subr.mxu0 0.0
    %515 = vmatpush1.msra.mxu0 0.0
    %516 = vmatprep.subr.mxu0 0.0
    %517 = vmatpush1.msra.mxu0 0.0
    %518 = vmatprep.subr.mxu0 0.0
    %519 = vmatpush1.msra.mxu0 0.0
    %520 = vmatprep.subr.mxu0 0.0
    %521 = vmatpush1.msra.mxu0 0.0
    %522 = vmatprep.subr.mxu0 0.0
    %523 = vmatpush1.msra.mxu0 0.0
    %524 = vmatprep.subr.mxu0 0.0
    %525 = vmatpush1.msra.mxu0 0.0
    %526 = vmatprep.subr.mxu0 0.0
    %527 = vmatpush1.msra.mxu0 0.0
    %528 = vmatprep.subr.mxu0 0.0
    %529 = vmatpush1.msra.mxu0 0.0
    %530 = vmatprep.subr.mxu0 0.0
    %531 = vmatpush1.msra.mxu0 0.0
    %532 = vmatprep.subr.mxu0 0.0
    %533 = vmatpush1.msra.mxu0 0.0
    %534 = vmatprep.subr.mxu0 0.0
    %535 = vmatpush1.msra.mxu0 0.0
    %536 = vmatprep.subr.mxu0 0.0
    %537 = vmatpush1.msra.mxu0 0.0
    %538 = vmatprep.mubr.f32.mxu0 0.0
    %v539 = vand.u32 %v37, 4294901760
    %v540 = vsub.f32 %v37, %v539
    %541 = vmatmul.mubr.f32.gmra.mrb[0].mxu0 %v540
    %v542 = vpop.f32.mrb[0].mxu0
    %v543 = vadd.f32 %v406, %v542
    %v544 = vpop.f32.mrb[0].mxu0
    %v545 = vadd.f32 %v408, %v544
    %546 = vdwg.mxu0
    %v547 = vand.u32 %v39, 4294901760
    %548 = vmatprep.subr.mxu0 %v547
    %v549 = vand.u32 %v38, 4294901760
    %550 = vmatpush1.msra.mxu0 %v549
    %v551 = vand.u32 %v41, 4294901760
    %552 = vmatprep.subr.mxu0 %v551
    %v553 = vand.u32 %v40, 4294901760
    %554 = vmatpush1.msra.mxu0 %v553
    %v555 = vand.u32 %v43, 4294901760
    %556 = vmatprep.subr.mxu0 %v555
    %v557 = vand.u32 %v42, 4294901760
    %558 = vmatpush1.msra.mxu0 %v557
    %v559 = vand.u32 %v45, 4294901760
    %560 = vmatprep.subr.mxu0 %v559
    %v561 = vand.u32 %v44, 4294901760
    %562 = vmatpush1.msra.mxu0 %v561
    %v563 = vand.u32 %v47, 4294901760
    %564 = vmatprep.subr.mxu0 %v563
    %v565 = vand.u32 %v46, 4294901760
    %566 = vmatpush1.msra.mxu0 %v565
    %v567 = vand.u32 %v49, 4294901760
    %568 = vmatprep.subr.mxu0 %v567
    %v569 = vand.u32 %v48, 4294901760
    %570 = vmatpush1.msra.mxu0 %v569
    %v571 = vand.u32 %v51, 4294901760
    %572 = vmatprep.subr.mxu0 %v571
    %v573 = vand.u32 %v50, 4294901760
    %574 = vmatpush1.msra.mxu0 %v573
    %v575 = vand.u32 %v53, 4294901760
    %576 = vmatprep.subr.mxu0 %v575
    %v577 = vand.u32 %v52, 4294901760
    %578 = vmatpush1.msra.mxu0 %v577
    %v579 = vand.u32 %v55, 4294901760
    %580 = vmatprep.subr.mxu0 %v579
    %v581 = vand.u32 %v54, 4294901760
    %582 = vmatpush1.msra.mxu0 %v581
    %v583 = vand.u32 %v57, 4294901760
    %584 = vmatprep.subr.mxu0 %v583
    %v585 = vand.u32 %v56, 4294901760
    %586 = vmatpush1.msra.mxu0 %v585
    %v587 = vand.u32 %v59, 4294901760
    %588 = vmatprep.subr.mxu0 %v587
    %v589 = vand.u32 %v58, 4294901760
    %590 = vmatpush1.msra.mxu0 %v589
    %v591 = vand.u32 %v61, 4294901760
    %592 = vmatprep.subr.mxu0 %v591
    %v593 = vand.u32 %v60, 4294901760
    %594 = vmatpush1.msra.mxu0 %v593
    %v595 = vand.u32 %v63, 4294901760
    %596 = vmatprep.subr.mxu0 %v595
    %v597 = vand.u32 %v62, 4294901760
    %598 = vmatpush1.msra.mxu0 %v597
    %v599 = vand.u32 %v65, 4294901760
    %600 = vmatprep.subr.mxu0 %v599
    %v601 = vand.u32 %v64, 4294901760
    %602 = vmatpush1.msra.mxu0 %v601
    %v603 = vand.u32 %v67, 4294901760
    %604 = vmatprep.subr.mxu0 %v603
    %v605 = vand.u32 %v66, 4294901760
    %606 = vmatpush1.msra.mxu0 %v605
    %v607 = vand.u32 %v69, 4294901760
    %608 = vmatprep.subr.mxu0 %v607
    %v609 = vand.u32 %v68, 4294901760
    %610 = vmatpush1.msra.mxu0 %v609
    %611 = vmatprep.subr.mxu0 0.0
    %612 = vmatpush1.msra.mxu0 0.0
    %613 = vmatprep.subr.mxu0 0.0
    %614 = vmatpush1.msra.mxu0 0.0
    %615 = vmatprep.subr.mxu0 0.0
    %616 = vmatpush1.msra.mxu0 0.0
    %617 = vmatprep.subr.mxu0 0.0
    %618 = vmatpush1.msra.mxu0 0.0
    %619 = vmatprep.subr.mxu0 0.0
    %620 = vmatpush1.msra.mxu0 0.0
    %621 = vmatprep.subr.mxu0 0.0
    %622 = vmatpush1.msra.mxu0 0.0
    %623 = vmatprep.subr.mxu0 0.0
    %624 = vmatpush1.msra.mxu0 0.0
    %625 = vmatprep.subr.mxu0 0.0
    %626 = vmatpush1.msra.mxu0 0.0
    %627 = vmatprep.subr.mxu0 0.0
    %628 = vmatpush1.msra.mxu0 0.0
    %629 = vmatprep.subr.mxu0 0.0
    %630 = vmatpush1.msra.mxu0 0.0
    %631 = vmatprep.subr.mxu0 0.0
    %632 = vmatpush1.msra.mxu0 0.0
    %633 = vmatprep.subr.mxu0 0.0
    %634 = vmatpush1.msra.mxu0 0.0
    %635 = vmatprep.subr.mxu0 0.0
    %636 = vmatpush1.msra.mxu0 0.0
    %637 = vmatprep.subr.mxu0 0.0
    %638 = vmatpush1.msra.mxu0 0.0
    %639 = vmatprep.subr.mxu0 0.0
    %640 = vmatpush1.msra.mxu0 0.0
    %641 = vmatprep.subr.mxu0 0.0
    %642 = vmatpush1.msra.mxu0 0.0
    %643 = vmatprep.mubr.f32.mxu0 0.0
    %v644 = vand.u32 %v37, 4294901760
    %v645 = vsub.f32 %v37, %v644
    %v646 = vand.u32 %v645, 4294901760
    %647 = vmatmul.mubr.f32.gmra.mrb[0].mxu0 %v646
    %v648 = vpop.f32.mrb[0].mxu0
    %v649 = vadd.f32 %v543, %v648
    %v650 = vpop.f32.mrb[0].mxu0
    %v651 = vadd.f32 %v545, %v650
    %652 = vdwg.mxu0
    %v653 = vand.u32 %v39, 4294901760
    %v654 = vsub.f32 %v39, %v653
    %v655 = vand.u32 %v654, 4294901760
    %656 = vmatprep.subr.mxu0 %v655
    %v657 = vand.u32 %v38, 4294901760
    %v658 = vsub.f32 %v38, %v657
    %v659 = vand.u32 %v658, 4294901760
    %660 = vmatpush1.msra.mxu0 %v659
    %v661 = vand.u32 %v41, 4294901760
    %v662 = vsub.f32 %v41, %v661
    %v663 = vand.u32 %v662, 4294901760
    %664 = vmatprep.subr.mxu0 %v663
    %v665 = vand.u32 %v40, 4294901760
    %v666 = vsub.f32 %v40, %v665
    %v667 = vand.u32 %v666, 4294901760
    %668 = vmatpush1.msra.mxu0 %v667
    %v669 = vand.u32 %v43, 4294901760
    %v670 = vsub.f32 %v43, %v669
    %v671 = vand.u32 %v670, 4294901760
    %672 = vmatprep.subr.mxu0 %v671
    %v673 = vand.u32 %v42, 4294901760
    %v674 = vsub.f32 %v42, %v673
    %v675 = vand.u32 %v674, 4294901760
    %676 = vmatpush1.msra.mxu0 %v675
    %v677 = vand.u32 %v45, 4294901760
    %v678 = vsub.f32 %v45, %v677
    %v679 = vand.u32 %v678, 4294901760
    %680 = vmatprep.subr.mxu0 %v679
    %v681 = vand.u32 %v44, 4294901760
    %v682 = vsub.f32 %v44, %v681
    %v683 = vand.u32 %v682, 4294901760
    %684 = vmatpush1.msra.mxu0 %v683
    %v685 = vand.u32 %v47, 4294901760
    %v686 = vsub.f32 %v47, %v685
    %v687 = vand.u32 %v686, 4294901760
    %688 = vmatprep.subr.mxu0 %v687
    %v689 = vand.u32 %v46, 4294901760
    %v690 = vsub.f32 %v46, %v689
    %v691 = vand.u32 %v690, 4294901760
    %692 = vmatpush1.msra.mxu0 %v691
    %v693 = vand.u32 %v49, 4294901760
    %v694 = vsub.f32 %v49, %v693
    %v695 = vand.u32 %v694, 4294901760
    %696 = vmatprep.subr.mxu0 %v695
    %v697 = vand.u32 %v48, 4294901760
    %v698 = vsub.f32 %v48, %v697
    %v699 = vand.u32 %v698, 4294901760
    %700 = vmatpush1.msra.mxu0 %v699
    %v701 = vand.u32 %v51, 4294901760
    %v702 = vsub.f32 %v51, %v701
    %v703 = vand.u32 %v702, 4294901760
    %704 = vmatprep.subr.mxu0 %v703
    %v705 = vand.u32 %v50, 4294901760
    %v706 = vsub.f32 %v50, %v705
    %v707 = vand.u32 %v706, 4294901760
    %708 = vmatpush1.msra.mxu0 %v707
    %v709 = vand.u32 %v53, 4294901760
    %v710 = vsub.f32 %v53, %v709
    %v711 = vand.u32 %v710, 4294901760
    %712 = vmatprep.subr.mxu0 %v711
    %v713 = vand.u32 %v52, 4294901760
    %v714 = vsub.f32 %v52, %v713
    %v715 = vand.u32 %v714, 4294901760
    %716 = vmatpush1.msra.mxu0 %v715
    %v717 = vand.u32 %v55, 4294901760
    %v718 = vsub.f32 %v55, %v717
    %v719 = vand.u32 %v718, 4294901760
    %720 = vmatprep.subr.mxu0 %v719
    %v721 = vand.u32 %v54, 4294901760
    %v722 = vsub.f32 %v54, %v721
    %v723 = vand.u32 %v722, 4294901760
    %724 = vmatpush1.msra.mxu0 %v723
    %v725 = vand.u32 %v57, 4294901760
    %v726 = vsub.f32 %v57, %v725
    %v727 = vand.u32 %v726, 4294901760
    %728 = vmatprep.subr.mxu0 %v727
    %v729 = vand.u32 %v56, 4294901760
    %v730 = vsub.f32 %v56, %v729
    %v731 = vand.u32 %v730, 4294901760
    %732 = vmatpush1.msra.mxu0 %v731
    %v733 = vand.u32 %v59, 4294901760
    %v734 = vsub.f32 %v59, %v733
    %v735 = vand.u32 %v734, 4294901760
    %736 = vmatprep.subr.mxu0 %v735
    %v737 = vand.u32 %v58, 4294901760
    %v738 = vsub.f32 %v58, %v737
    %v739 = vand.u32 %v738, 4294901760
    %740 = vmatpush1.msra.mxu0 %v739
    %v741 = vand.u32 %v61, 4294901760
    %v742 = vsub.f32 %v61, %v741
    %v743 = vand.u32 %v742, 4294901760
    %744 = vmatprep.subr.mxu0 %v743
    %v745 = vand.u32 %v60, 4294901760
    %v746 = vsub.f32 %v60, %v745
    %v747 = vand.u32 %v746, 4294901760
    %748 = vmatpush1.msra.mxu0 %v747
    %v749 = vand.u32 %v63, 4294901760
    %v750 = vsub.f32 %v63, %v749
    %v751 = vand.u32 %v750, 4294901760
    %752 = vmatprep.subr.mxu0 %v751
    %v753 = vand.u32 %v62, 4294901760
    %v754 = vsub.f32 %v62, %v753
    %v755 = vand.u32 %v754, 4294901760
    %756 = vmatpush1.msra.mxu0 %v755
    %v757 = vand.u32 %v65, 4294901760
    %v758 = vsub.f32 %v65, %v757
    %v759 = vand.u32 %v758, 4294901760
    %760 = vmatprep.subr.mxu0 %v759
    %v761 = vand.u32 %v64, 4294901760
    %v762 = vsub.f32 %v64, %v761
    %v763 = vand.u32 %v762, 4294901760
    %764 = vmatpush1.msra.mxu0 %v763
    %v765 = vand.u32 %v67, 4294901760
    %v766 = vsub.f32 %v67, %v765
    %v767 = vand.u32 %v766, 4294901760
    %768 = vmatprep.subr.mxu0 %v767
    %v769 = vand.u32 %v66, 4294901760
    %v770 = vsub.f32 %v66, %v769
    %v771 = vand.u32 %v770, 4294901760
    %772 = vmatpush1.msra.mxu0 %v771
    %v773 = vand.u32 %v69, 4294901760
    %v774 = vsub.f32 %v69, %v773
    %v775 = vand.u32 %v774, 4294901760
    %776 = vmatprep.subr.mxu0 %v775
    %v777 = vand.u32 %v68, 4294901760
    %v778 = vsub.f32 %v68, %v777
    %v779 = vand.u32 %v778, 4294901760
    %780 = vmatpush1.msra.mxu0 %v779
    %781 = vmatprep.subr.mxu0 0.0
    %782 = vmatpush1.msra.mxu0 0.0
    %783 = vmatprep.subr.mxu0 0.0
    %784 = vmatpush1.msra.mxu0 0.0
    %785 = vmatprep.subr.mxu0 0.0
    %786 = vmatpush1.msra.mxu0 0.0
    %787 = vmatprep.subr.mxu0 0.0
    %788 = vmatpush1.msra.mxu0 0.0
    %789 = vmatprep.subr.mxu0 0.0
    %790 = vmatpush1.msra.mxu0 0.0
    %791 = vmatprep.subr.mxu0 0.0
    %792 = vmatpush1.msra.mxu0 0.0
    %793 = vmatprep.subr.mxu0 0.0
    %794 = vmatpush1.msra.mxu0 0.0
    %795 = vmatprep.subr.mxu0 0.0
    %796 = vmatpush1.msra.mxu0 0.0
    %797 = vmatprep.subr.mxu0 0.0
    %798 = vmatpush1.msra.mxu0 0.0
    %799 = vmatprep.subr.mxu0 0.0
    %800 = vmatpush1.msra.mxu0 0.0
    %801 = vmatprep.subr.mxu0 0.0
    %802 = vmatpush1.msra.mxu0 0.0
    %803 = vmatprep.subr.mxu0 0.0
    %804 = vmatpush1.msra.mxu0 0.0
    %805 = vmatprep.subr.mxu0 0.0
    %806 = vmatpush1.msra.mxu0 0.0
    %807 = vmatprep.subr.mxu0 0.0
    %808 = vmatpush1.msra.mxu0 0.0
    %809 = vmatprep.subr.mxu0 0.0
    %810 = vmatpush1.msra.mxu0 0.0
    %811 = vmatprep.subr.mxu0 0.0
    %812 = vmatpush1.msra.mxu0 0.0
    %813 = vmatprep.mubr.f32.mxu0 0.0
    %v814 = vand.u32 %v37, 4294901760
    %815 = vmatmul.mubr.f32.gmra.mrb[0].mxu0 %v814
    %v816 = vpop.f32.mrb[0].mxu0
    %v817 = vadd.f32 %v649, %v816
    %v818 = vpop.f32.mrb[0].mxu0
    %v819 = vadd.f32 %v651, %v818
    %820 = vdwg.mxu0
    %v821 = vand.u32 %v39, 4294901760
    %822 = vmatprep.subr.mxu0 %v821
    %v823 = vand.u32 %v38, 4294901760
    %824 = vmatpush1.msra.mxu0 %v823
    %v825 = vand.u32 %v41, 4294901760
    %826 = vmatprep.subr.mxu0 %v825
    %v827 = vand.u32 %v40, 4294901760
    %828 = vmatpush1.msra.mxu0 %v827
    %v829 = vand.u32 %v43, 4294901760
    %830 = vmatprep.subr.mxu0 %v829
    %v831 = vand.u32 %v42, 4294901760
    %832 = vmatpush1.msra.mxu0 %v831
    %v833 = vand.u32 %v45, 4294901760
    %834 = vmatprep.subr.mxu0 %v833
    %v835 = vand.u32 %v44, 4294901760
    %836 = vmatpush1.msra.mxu0 %v835
    %v837 = vand.u32 %v47, 4294901760
    %838 = vmatprep.subr.mxu0 %v837
    %v839 = vand.u32 %v46, 4294901760
    %840 = vmatpush1.msra.mxu0 %v839
    %v841 = vand.u32 %v49, 4294901760
    %842 = vmatprep.subr.mxu0 %v841
    %v843 = vand.u32 %v48, 4294901760
    %844 = vmatpush1.msra.mxu0 %v843
    %v845 = vand.u32 %v51, 4294901760
    %846 = vmatprep.subr.mxu0 %v845
    %v847 = vand.u32 %v50, 4294901760
    %848 = vmatpush1.msra.mxu0 %v847
    %v849 = vand.u32 %v53, 4294901760
    %850 = vmatprep.subr.mxu0 %v849
    %v851 = vand.u32 %v52, 4294901760
    %852 = vmatpush1.msra.mxu0 %v851
    %v853 = vand.u32 %v55, 4294901760
    %854 = vmatprep.subr.mxu0 %v853
    %v855 = vand.u32 %v54, 4294901760
    %856 = vmatpush1.msra.mxu0 %v855
    %v857 = vand.u32 %v57, 4294901760
    %858 = vmatprep.subr.mxu0 %v857
    %v859 = vand.u32 %v56, 4294901760
    %860 = vmatpush1.msra.mxu0 %v859
    %v861 = vand.u32 %v59, 4294901760
    %862 = vmatprep.subr.mxu0 %v861
    %v863 = vand.u32 %v58, 4294901760
    %864 = vmatpush1.msra.mxu0 %v863
    %v865 = vand.u32 %v61, 4294901760
    %866 = vmatprep.subr.mxu0 %v865
    %v867 = vand.u32 %v60, 4294901760
    %868 = vmatpush1.msra.mxu0 %v867
    %v869 = vand.u32 %v63, 4294901760
    %870 = vmatprep.subr.mxu0 %v869
    %v871 = vand.u32 %v62, 4294901760
    %872 = vmatpush1.msra.mxu0 %v871
    %v873 = vand.u32 %v65, 4294901760
    %874 = vmatprep.subr.mxu0 %v873
    %v875 = vand.u32 %v64, 4294901760
    %876 = vmatpush1.msra.mxu0 %v875
    %v877 = vand.u32 %v67, 4294901760
    %878 = vmatprep.subr.mxu0 %v877
    %v879 = vand.u32 %v66, 4294901760
    %880 = vmatpush1.msra.mxu0 %v879
    %v881 = vand.u32 %v69, 4294901760
    %882 = vmatprep.subr.mxu0 %v881
    %v883 = vand.u32 %v68, 4294901760
    %884 = vmatpush1.msra.mxu0 %v883
    %885 = vmatprep.subr.mxu0 0.0
    %886 = vmatpush1.msra.mxu0 0.0
    %887 = vmatprep.subr.mxu0 0.0
    %888 = vmatpush1.msra.mxu0 0.0
    %889 = vmatprep.subr.mxu0 0.0
    %890 = vmatpush1.msra.mxu0 0.0
    %891 = vmatprep.subr.mxu0 0.0
    %892 = vmatpush1.msra.mxu0 0.0
    %893 = vmatprep.subr.mxu0 0.0
    %894 = vmatpush1.msra.mxu0 0.0
    %895 = vmatprep.subr.mxu0 0.0
    %896 = vmatpush1.msra.mxu0 0.0
    %897 = vmatprep.subr.mxu0 0.0
    %898 = vmatpush1.msra.mxu0 0.0
    %899 = vmatprep.subr.mxu0 0.0
    %900 = vmatpush1.msra.mxu0 0.0
    %901 = vmatprep.subr.mxu0 0.0
    %902 = vmatpush1.msra.mxu0 0.0
    %903 = vmatprep.subr.mxu0 0.0
    %904 = vmatpush1.msra.mxu0 0.0
    %905 = vmatprep.subr.mxu0 0.0
    %906 = vmatpush1.msra.mxu0 0.0
    %907 = vmatprep.subr.mxu0 0.0
    %908 = vmatpush1.msra.mxu0 0.0
    %909 = vmatprep.subr.mxu0 0.0
    %910 = vmatpush1.msra.mxu0 0.0
    %911 = vmatprep.subr.mxu0 0.0
    %912 = vmatpush1.msra.mxu0 0.0
    %913 = vmatprep.subr.mxu0 0.0
    %914 = vmatpush1.msra.mxu0 0.0
    %915 = vmatprep.subr.mxu0 0.0
    %916 = vmatpush1.msra.mxu0 0.0
    %917 = vmatprep.mubr.f32.mxu0 0.0
    %v918 = vand.u32 %v37, 4294901760
    %919 = vmatmul.mubr.f32.gmra.mrb[0].mxu0 %v918
    %v920 = vpop.f32.mrb[0].mxu0
    %v921 = vadd.f32 %v817, %v920
    %v922 = vpop.f32.mrb[0].mxu0
    %v923 = vadd.f32 %v819, %v922
    %924 = vdwg.mxu0
    %v925 = vlaneseq
    %v926 = vand.u32 %v925, 127
    %v927 = vadd.s32 %v926, 128
    %v928 = vand.u32 %v926, 1
    %v929 = vand.u32 %v927, 1
    %vm930 = vcmp.eq.s32.totalorder %v928, 0
    %vm931 = vcmp.eq.s32.totalorder %v929, 0
    %v932 = vstv %s31
    %v933 = vstv %s32
    %v934 = vsel %vm930, %v932, %v933
    %v935 = vsel %vm931, %v932, %v933
    %v936 = vstv %s33
    %v937 = vstv %s34
    %v938 = vsel %vm930, %v936, %v937
    %v939 = vsel %vm931, %v936, %v937
    %v940 = vstv %s35
    %v941 = vstv %s36
    %v942 = vsel %vm930, %v940, %v941
    %v943 = vsel %vm931, %v940, %v941
    %v944 = vstv %s27
    %v945 = vmul.f32 %v921, %v944
    %v946 = vmul.f32 %v923, %v944
    %v947 = vstv %s29
    %v948 = vadd.f32 %v945, %v947
    %v949 = vadd.f32 %v946, %v947
    %v950 = vmax.f32 %v948, 0.0
    %v951 = vmax.f32 %v949, 0.0
    %v952 = vstv %s28
    %v953 = vmul.f32 %v921, %v952
    %v954 = vmul.f32 %v923, %v952
    %v955 = vstv %s30
    %v956 = vadd.f32 %v953, %v955
    %v957 = vadd.f32 %v954, %v955
    %v958 = vmax.f32 %v956, 0.0
    %v959 = vmax.f32 %v957, 0.0
    %v960 = vmul.f32 %v950, %v934
    %v961 = vmul.f32 %v951, %v935
    %v962 = vmul.f32 %v958, %v938
    %v963 = vmul.f32 %v959, %v939
    %v964 = vadd.f32 %v962, %v942
    %v965 = vadd.f32 %v963, %v943
    %v966 = vadd.f32 %v960, %v964
    %v967 = vadd.f32 %v961, %v965
    %968 = vst [vmem:[%s3] sm:$0xff] %v966
    %969 = vst [vmem:[%s3 + $0x8] sm:$0xff] %v967
    // Predicated region
    $region18: #{qnetwork_forward.1} parent=1 // pred_check
      _
    $region19: #{qnetwork_forward.1} parent=1 // pred_check_branch
      %971 = sbr.rel (0) target = $region21
    $region20: #{qnetwork_forward.1} parent=1 // pred_region
      _
    $region21: #{qnetwork_forward.1} parent=1 // pred_fallthru
      _
    // Predicated region
    $region22: #{qnetwork_forward.1} parent=1 // pred_check
      _
    $region23: #{qnetwork_forward.1} parent=1 // pred_check_branch
      %973 = sbr.rel (0) target = $region25
    $region24: #{qnetwork_forward.1} parent=1 // pred_region
      _
    $region25: #{qnetwork_forward.1} parent=1 // pred_fallthru
      _
    %974 = vsyncpa [#allocation3], 1

</llo_original>
